<compile_context>
chip_gen: v6e
topology: v6e:2x2x1
jax: 0.10.0
libtpu: 0.0.40
codegen_flags: <defaults>
</compile_context>

<pallas_src>
import functools

import jax
import jax.numpy as jnp
from jax.experimental import pallas as pl
from jax.experimental.pallas import tpu as pltpu

IGNORE_INDEX = 255


def _ce_kernel(x_ref, t_ref, sum_ref, cnt_ref, *, s_inner, tile_s, s_total):
    si = pl.program_id(2)

    @pl.when(si == 0)
    def _():
        sum_ref[...] = jnp.zeros_like(sum_ref)
        cnt_ref[...] = jnp.zeros_like(cnt_ref)

    x = x_ref[0].astype(jnp.float32)          # (C, TILE_S)
    t = t_ref[0]                              # (1, TILE_S) int32
    c, ts = x.shape

    # Global spatial column of every lane; masks the ragged tail (if any).
    blk = pl.program_id(1) * s_inner + si
    col = jax.lax.broadcasted_iota(jnp.int32, (1, ts), 1) + blk * tile_s
    valid = (t != IGNORE_INDEX) & (col < s_total)           # (1, TILE_S)

    # Numerically stable log-softmax pieces over the channel (sublane) axis.
    m = jnp.max(x, axis=0, keepdims=True)                   # (1, TILE_S)
    lse = jnp.log(jnp.sum(jnp.exp(x - m), axis=0, keepdims=True))

    # Gather x[target] via one-hot; ignored / out-of-range rows masked below.
    cls = jax.lax.broadcasted_iota(jnp.int32, (c, ts), 0)
    onehot = (cls == t).astype(jnp.float32)                 # (C, TILE_S)
    picked = jnp.sum(x * onehot, axis=0, keepdims=True)     # (1, TILE_S)

    # -log_softmax(x)[target] = m + lse - x[target]
    nll = jnp.where(valid, m + lse - picked, 0.0)

    # Broadcast-accumulate the tile partials into the (8, 128) output block;
    # every element of the block ends up holding the same partial value.
    sum_ref[...] = sum_ref[...] + jnp.sum(nll)
    cnt_ref[...] = cnt_ref[...] + jnp.sum(valid.astype(jnp.float32))


@jax.jit
def cross_entropy_loss_2d(logits_nchw, targets):
    """logits_nchw: (N, C, H, W); targets: (N, 1, H, W) or (N, H, W) ints.

    Returns the mean of -log_softmax(logits)[target] over pixels whose
    target != 255 (PyTorch NLLLoss2d(size_average=True, ignore_index=255)).
    """
    n, c, h, w = logits_nchw.shape
    s = h * w

    x = logits_nchw.reshape(n, c, s)                    # free view, no transpose
    t = jnp.reshape(targets, (n, 1, s)).astype(jnp.int32)

    x_bytes = jnp.dtype(logits_nchw.dtype).itemsize

    # Spatial tile: aim for ~2 MiB of f32 work per block (lane dim multiple
    # of 128, or the full spatial extent when it is small).
    if s <= 128:
        tile_s = s
    else:
        s_ceil = ((s + 127) // 128) * 128
        target_lanes = max(128, ((2 * 1024 * 1024) // (c * 4)) // 128 * 128)
        tile_s = min(target_lanes, s_ceil)

    num_tiles = -(-s // tile_s)
    # Split the spatial tiles into a few independent chunks when it divides
    # evenly: extra megacore-parallel work (v7x) and finer partial sums.
    s_outer = next((d for d in (4, 2) if num_tiles % d == 0), 1)
    s_inner = num_tiles // s_outer

    out_rows = n * s_outer * 8        # one (8, 128) partial tile per (n, chunk)

    kernel = functools.partial(
        _ce_kernel, s_inner=s_inner, tile_s=tile_s, s_total=s)

    cost = pl.CostEstimate(
        flops=6 * n * c * s,
        transcendentals=n * s * (c + 1),
        bytes_accessed=n * c * s * x_bytes + n * s * 4 + 2 * out_rows * 128 * 4,
    )

    vmem_limit = int(min(64 * 1024 * 1024,
                         max(16 * 1024 * 1024, 12 * c * tile_s * 4)))

    sums, cnts = pl.pallas_call(
        kernel,
        out_shape=(
            jax.ShapeDtypeStruct((out_rows, 128), jnp.float32),
            jax.ShapeDtypeStruct((out_rows, 128), jnp.float32),
        ),
        grid_spec=pltpu.PrefetchScalarGridSpec(
            num_scalar_prefetch=0,
            grid=(n, s_outer, s_inner),
            in_specs=[
                pl.BlockSpec((1, c, tile_s),
                             lambda bn, so, si: (bn, 0, so * s_inner + si)),
                pl.BlockSpec((1, 1, tile_s),
                             lambda bn, so, si: (bn, 0, so * s_inner + si)),
            ],
            out_specs=[
                pl.BlockSpec((8, 128), lambda bn, so, si: (bn * s_outer + so, 0)),
                pl.BlockSpec((8, 128), lambda bn, so, si: (bn * s_outer + so, 0)),
            ],
        ),
        compiler_params=pltpu.CompilerParams(
            dimension_semantics=("parallel", "parallel", "arbitrary"),
            vmem_limit_bytes=vmem_limit,
        ),
        cost_estimate=cost,
    )(x, t)

    # Each partial (8, 128) tile holds one value replicated; pick one element
    # per partial and finish the reduction + normalization here.
    total = jnp.sum(sums[::8, 0])
    count = jnp.sum(cnts[::8, 0])
    return (total / count).astype(jnp.float32)


def _reference(logits_nchw, targets):
    n, c, h, w = logits_nchw.shape
    tgt = jnp.reshape(targets, (n, h, w)).astype(jnp.int32)
    logp = jax.nn.log_softmax(logits_nchw.astype(jnp.float32), axis=1)
    logp = jnp.transpose(logp, (0, 2, 3, 1))            # (N, H, W, C)
    valid = tgt != IGNORE_INDEX
    t_safe = jnp.where(valid, tgt, 0)
    picked = jnp.take_along_axis(logp, t_safe[..., None], axis=-1)[..., 0]
    nll = jnp.where(valid, -picked, 0.0)
    return jnp.sum(nll) / jnp.sum(valid.astype(jnp.float32))


if __name__ == "__main__":
    key = jax.random.PRNGKey(0)
    k1, k2, k3 = jax.random.split(key, 3)

    N, C, H, W = 2, 4, 16, 16
    logits = jax.random.normal(k1, (N, C, H, W), dtype=jnp.float32)
    targets = jax.random.randint(k2, (N, 1, H, W), 0, C, dtype=jnp.int32)
    # sprinkle in some ignore_index pixels
    ignore_mask = jax.random.bernoulli(k3, 0.1, (N, 1, H, W))
    targets = jnp.where(ignore_mask, IGNORE_INDEX, targets)

    loss = cross_entropy_loss_2d(logits, targets)
    jax.block_until_ready(loss)

    ref = _reference(logits, targets)
    assert jnp.allclose(loss, ref, atol=1e-5, rtol=1e-5), (loss, ref)

    print("KERNEL_OK")
</pallas_src>

<mosaic_0001>
module attributes {stable_mosaic.version = 11 : i64} {
  func.func @_ce_kernel(%arg0: i32, %arg1: i32, %arg2: i32, %arg3: memref<1x4x256xf32, #tpu.memory_space<vmem>>, %arg4: memref<1x1x256xi32, #tpu.memory_space<vmem>>, %arg5: memref<8x128xf32, #tpu.memory_space<vmem>>, %arg6: memref<8x128xf32, #tpu.memory_space<vmem>>) attributes {dimension_semantics = [#tpu.dimension_semantics<parallel>, #tpu.dimension_semantics<parallel>, #tpu.dimension_semantics<arbitrary>], iteration_bounds = array<i64: 2, 1, 1>, scalar_prefetch = 0 : i64, scratch_operands = 0 : i64, tpu.core_type = #tpu.core_type<tc>, window_params = [{transform_indices = @transform_0, window_bounds = array<i64: 1, 4, 256>}, {transform_indices = @transform_1, window_bounds = array<i64: 1, 1, 256>}, {transform_indices = @transform_2, window_bounds = array<i64: 8, 128>}, {transform_indices = @transform_3, window_bounds = array<i64: 8, 128>}]} {
    %c0_i32 = arith.constant 0 : i32
    %0 = arith.cmpi eq, %arg2, %c0_i32 : i32
    %1 = arith.extui %0 : i1 to i32
    %c0_i32_0 = arith.constant 0 : i32
    %2 = arith.cmpi ne, %1, %c0_i32_0 : i32
    scf.if %2 {
      %cst_20 = arith.constant 0.000000e+00 : f32
      %56 = vector.broadcast %cst_20 : f32 to vector<8x128xf32>
      %c0_21 = arith.constant 0 : index
      %c0_22 = arith.constant 0 : index
      %57 = vector.load %arg5[%c0_21, %c0_22] : memref<8x128xf32, #tpu.memory_space<vmem>>, vector<8x128xf32>
      tpu.vector_store %arg5[%c0_21, %c0_22], %56 {strides = array<i32>} : memref<8x128xf32, #tpu.memory_space<vmem>>, vector<8x128xf32>,
      %cst_23 = arith.constant 0.000000e+00 : f32
      %58 = vector.broadcast %cst_23 : f32 to vector<8x128xf32>
      %c0_24 = arith.constant 0 : index
      %c0_25 = arith.constant 0 : index
      %59 = vector.load %arg6[%c0_24, %c0_25] : memref<8x128xf32, #tpu.memory_space<vmem>>, vector<8x128xf32>
      tpu.vector_store %arg6[%c0_24, %c0_25], %58 {strides = array<i32>} : memref<8x128xf32, #tpu.memory_space<vmem>>, vector<8x128xf32>,
    } else {
    }
    %c0 = arith.constant 0 : index
    %c0_1 = arith.constant 0 : index
    %c0_2 = arith.constant 0 : index
    %3 = vector.load %arg3[%c0, %c0_1, %c0_2] : memref<1x4x256xf32, #tpu.memory_space<vmem>>, vector<1x4x256xf32>
    %4 = vector.shape_cast %3 : vector<1x4x256xf32> to vector<4x256xf32>
    %c0_3 = arith.constant 0 : index
    %c0_4 = arith.constant 0 : index
    %c0_5 = arith.constant 0 : index
    %5 = vector.load %arg4[%c0_3, %c0_4, %c0_5] : memref<1x1x256xi32, #tpu.memory_space<vmem>>, vector<1x1x256xi32>
    %6 = vector.shape_cast %5 : vector<1x1x256xi32> to vector<1x256xi32>
    %c1_i32 = arith.constant 1 : i32
    %7 = arith.muli %arg1, %c1_i32 : i32
    %8 = arith.addi %7, %arg2 : i32
    %9 = tpu.iota {dimensions = array<i32: 1>} : vector<1x256xi32>
    %c256_i32 = arith.constant 256 : i32
    %10 = arith.muli %8, %c256_i32 : i32
    %11 = vector.broadcast %10 : i32 to vector<1x256xi32>
    %12 = arith.addi %9, %11 : vector<1x256xi32>
    %c255_i32 = arith.constant 255 : i32
    %13 = vector.broadcast %c255_i32 : i32 to vector<1x256xi32>
    %14 = arith.cmpi ne, %6, %13 : vector<1x256xi32>
    %c256_i32_6 = arith.constant 256 : i32
    %15 = vector.broadcast %c256_i32_6 : i32 to vector<1x256xi32>
    %16 = arith.cmpi slt, %12, %15 : vector<1x256xi32>
    %17 = arith.andi %14, %16 : vector<1x256xi1>
    %cst = arith.constant dense<0xFF800000> : vector<256xf32>
    %18 = vector.multi_reduction <maximumf>, %4, %cst [0] : vector<4x256xf32> to vector<256xf32>
    %19 = vector.shape_cast %18 : vector<256xf32> to vector<1x256xf32>
    %20 = vector.broadcast %19 : vector<1x256xf32> to vector<4x256xf32>
    %21 = arith.subf %4, %20 : vector<4x256xf32>
    %22 = math.exp %21 : vector<4x256xf32>
    %cst_7 = arith.constant dense<0.000000e+00> : vector<256xf32>
    %23 = vector.multi_reduction <add>, %22, %cst_7 [0] : vector<4x256xf32> to vector<256xf32>
    %24 = vector.shape_cast %23 : vector<256xf32> to vector<1x256xf32>
    %25 = math.log %24 : vector<1x256xf32>
    %26 = tpu.iota {dimensions = array<i32: 0>} : vector<4x256xi32>
    %27 = vector.broadcast %6 : vector<1x256xi32> to vector<4x256xi32>
    %28 = arith.cmpi eq, %26, %27 : vector<4x256xi32>
    %29 = arith.extui %28 : vector<4x256xi1> to vector<4x256xi32>
    %30 = arith.sitofp %29 : vector<4x256xi32> to vector<4x256xf32>
    %31 = arith.mulf %4, %30 : vector<4x256xf32>
    %cst_8 = arith.constant dense<0.000000e+00> : vector<256xf32>
    %32 = vector.multi_reduction <add>, %31, %cst_8 [0] : vector<4x256xf32> to vector<256xf32>
    %33 = vector.shape_cast %32 : vector<256xf32> to vector<1x256xf32>
    %34 = arith.addf %19, %25 : vector<1x256xf32>
    %35 = arith.subf %34, %33 : vector<1x256xf32>
    %cst_9 = arith.constant 0.000000e+00 : f32
    %36 = vector.broadcast %cst_9 : f32 to vector<1x256xf32>
    %37 = arith.select %17, %35, %36 : vector<1x256xi1>, vector<1x256xf32>
    %c0_10 = arith.constant 0 : index
    %c0_11 = arith.constant 0 : index
    %38 = vector.load %arg5[%c0_10, %c0_11] : memref<8x128xf32, #tpu.memory_space<vmem>>, vector<8x128xf32>
    %39 = vector.shape_cast %37 : vector<1x256xf32> to vector<1x1x256xf32>
    %cst_12 = arith.constant dense<0.000000e+00> : vector<1xf32>
    %40 = vector.multi_reduction <add>, %39, %cst_12 [1, 2] : vector<1x1x256xf32> to vector<1xf32>
    %41 = vector.shape_cast %40 : vector<1xf32> to vector<1x1x1xf32>
    %42 = vector.extract %41[0, 0, 0] : f32 from vector<1x1x1xf32>
    %43 = vector.broadcast %42 : f32 to vector<8x128xf32>
    %44 = arith.addf %38, %43 : vector<8x128xf32>
    %c0_13 = arith.constant 0 : index
    %c0_14 = arith.constant 0 : index
    %45 = vector.load %arg5[%c0_13, %c0_14] : memref<8x128xf32, #tpu.memory_space<vmem>>, vector<8x128xf32>
    tpu.vector_store %arg5[%c0_13, %c0_14], %44 {strides = array<i32>} : memref<8x128xf32, #tpu.memory_space<vmem>>, vector<8x128xf32>,
    %c0_15 = arith.constant 0 : index
    %c0_16 = arith.constant 0 : index
    %46 = vector.load %arg6[%c0_15, %c0_16] : memref<8x128xf32, #tpu.memory_space<vmem>>, vector<8x128xf32>
    %47 = arith.extui %17 : vector<1x256xi1> to vector<1x256xi32>
    %48 = arith.sitofp %47 : vector<1x256xi32> to vector<1x256xf32>
    %49 = vector.shape_cast %48 : vector<1x256xf32> to vector<1x1x256xf32>
    %cst_17 = arith.constant dense<0.000000e+00> : vector<1xf32>
    %50 = vector.multi_reduction <add>, %49, %cst_17 [1, 2] : vector<1x1x256xf32> to vector<1xf32>
    %51 = vector.shape_cast %50 : vector<1xf32> to vector<1x1x1xf32>
    %52 = vector.extract %51[0, 0, 0] : f32 from vector<1x1x1xf32>
    %53 = vector.broadcast %52 : f32 to vector<8x128xf32>
    %54 = arith.addf %46, %53 : vector<8x128xf32>
    %c0_18 = arith.constant 0 : index
    %c0_19 = arith.constant 0 : index
    %55 = vector.load %arg6[%c0_18, %c0_19] : memref<8x128xf32, #tpu.memory_space<vmem>>, vector<8x128xf32>
    tpu.vector_store %arg6[%c0_18, %c0_19], %54 {strides = array<i32>} : memref<8x128xf32, #tpu.memory_space<vmem>>, vector<8x128xf32>,
    return
  }
  func.func @transform_0(%arg0: i32, %arg1: i32, %arg2: i32) -> (i32, i32, i32) {
    %c1_i32 = arith.constant 1 : i32
    %0 = arith.muli %arg1, %c1_i32 : i32
    %1 = arith.addi %0, %arg2 : i32
    %c0_i32 = arith.constant 0 : i32
    %c0_i32_0 = arith.constant 0 : i32
    return %arg0, %c0_i32, %1 : i32, i32, i32
  }
  func.func @transform_1(%arg0: i32, %arg1: i32, %arg2: i32) -> (i32, i32, i32) {
    %c1_i32 = arith.constant 1 : i32
    %0 = arith.muli %arg1, %c1_i32 : i32
    %1 = arith.addi %0, %arg2 : i32
    %c0_i32 = arith.constant 0 : i32
    %c0_i32_0 = arith.constant 0 : i32
    return %arg0, %c0_i32, %1 : i32, i32, i32
  }
  func.func @transform_2(%arg0: i32, %arg1: i32, %arg2: i32) -> (i32, i32) {
    %c1_i32 = arith.constant 1 : i32
    %0 = arith.muli %arg0, %c1_i32 : i32
    %1 = arith.addi %0, %arg1 : i32
    %c0_i32 = arith.constant 0 : i32
    %c0_i32_0 = arith.constant 0 : i32
    return %1, %c0_i32 : i32, i32
  }
  func.func @transform_3(%arg0: i32, %arg1: i32, %arg2: i32) -> (i32, i32) {
    %c1_i32 = arith.constant 1 : i32
    %0 = arith.muli %arg0, %c1_i32 : i32
    %1 = arith.addi %0, %arg1 : i32
    %c0_i32 = arith.constant 0 : i32
    %c0_i32_0 = arith.constant 0 : i32
    return %1, %c0_i32 : i32, i32
  }
}

</mosaic_0001>

<llo_original>
// kernel: cross_entropy_loss_2d.1
$region0: #{cross_entropy_loss_2d.1}
  #allocation0 [shape = 'u32[]', space=smem, size = 0x4, offset = 0x4, fixed_abs, tag = 'smem constant byte address 0x4 - core index']
  #allocation1 [shape = 'u32[144,128]{1,0:T(1,128)}', space=vmem, size = 0x12000, scoped, tag = 'internal scratch']
  %s0 = inlined_call_operand.vmem [shape: f32[2,4,256], index: 0, kind: input, shape index: {}]
  %s1 = inlined_call_operand.vmem [shape: s32[2,1,256], index: 1, kind: input, shape index: {}]
  %s2 = inlined_call_operand.vmem [shape: f32[16,128], index: 2, kind: output, shape index: {0}]
  %s3 = inlined_call_operand.vmem [shape: f32[16,128], index: 3, kind: output, shape index: {1}]
  %4 = xla_tuple %s2, %s3
  %s5 = sld [smem:[#allocation0]]
  $region53: #{cross_entropy_loss_2d.1} parent=0
    _
  %s7 = ssub.s32 1, %s5
  %s8 = scalar_select 0, %s7, %s5
  loop: start=0, step=1, limit=4
  $region2: #{cross_entropy_loss_2d.1} parent=0 // loop_pre_header
    _
  $region3: #{cross_entropy_loss_2d.1} parent=0 // loop_header
    %s10 = sphi 0, %s14
    %p11 = scmp.ge.s32.totalorder %s10, 4
    %s17 = sphi 0, %s36
    %s18 = sphi 0, %s32
    %s19 = sphi 0, %s28
    %s20 = sphi 0, %s17
    %s21 = sphi 0, %s18
    %s22 = sphi 0, %s19
    %s23 = sphi 0, %s20
    %s24 = sphi 0, %s21
    %s25 = sphi 0, %s22
    %s43 = sphi 0, %s45
    %s46 = sphi 0, %s43
    %s47 = sphi 0, %s46
    %s63 = sphi 0, %s47
    %s73 = sphi 0, %s75
    %s76 = sphi 0, %s73
    %s77 = sphi 0, %s76
    %s93 = sphi 0, %s77
    %s101 = sphi 0, %s103
    %s104 = sphi 0, %s101
    %s105 = sphi 0, %s104
    %s121 = sphi 0, %s105
    %s129 = sphi 0, %s131
    %s132 = sphi 0, %s129
    %s133 = sphi 0, %s132
    %s149 = sphi 0, %s133
  $region4: #{cross_entropy_loss_2d.1} parent=0 // loop_header_branch
    %13 = sbr.rel (%p11) target = $region8
  $region5: #{cross_entropy_loss_2d.1} parent=0 // loop_body
    %s15 = ssub.s32 %s10, 1
    %s16 = ssub.s32 %s10, 2
    %s26 = sadd.s32 1, %s19
    %p27 = scmp.ge.s32.totalorder %s26, 1
    %s28 = scalar_select %p27, 0, %s26
    %s29 = sadd.s32 1, %s18
    %s30 = scalar_select %p27, %s29, %s18
    %p31 = scmp.ge.s32.totalorder %s30, 1
    %s32 = scalar_select %p31, 0, %s30
    %s33 = sadd.s32 1, %s17
    %s34 = scalar_select %p31, %s33, %s17
    %p35 = scmp.ge.s32.totalorder %s34, 2
    %s36 = scalar_select %p35, 0, %s34
    %s37 = sadd.s32 %s18, %s19
    %s38 = sadd.s32 %s32, %s28
    %s39 = ssub.s32 %s17, %s36
    %s40 = ssub.s32 %s37, %s38
    %s41 = sor.u32 %s39, %s40
    %p42 = scmp.eq.s32.totalorder %s41, 0
    %s44 = sadd.s32 %s43, 1
    %s45 = scalar_select %p42, %s43, %s44
    %p48 = pneg %p42
    %p49 = scmp.eq.s32.totalorder %s10, 1
    %p50 = por %p48, %p49
    %p51 = scmp.ne.s32.totalorder %s43, %s46
    %p52 = scmp.eq.s32.totalorder %s10, 0
    %p53 = por %p51, %p52
    %p54 = scmp.ne.s32.totalorder %s43, %s46
    %p55 = scmp.eq.s32.totalorder %s15, 1
    %p56 = por %p54, %p55
    %p57 = scmp.ne.s32.totalorder %s46, %s47
    %p58 = scmp.eq.s32.totalorder %s15, 0
    %p59 = por %p57, %p58
    %p60 = scmp.ne.s32.totalorder %s46, %s47
    %p61 = scmp.eq.s32.totalorder %s16, 1
    %p62 = por %p60, %p61
    %p64 = scmp.ne.s32.totalorder %s47, %s63
    %p65 = scmp.eq.s32.totalorder %s16, 0
    %p66 = por %p64, %p65
    %s67 = sadd.s32 %s18, %s19
    %s68 = sadd.s32 %s32, %s28
    %s69 = ssub.s32 %s17, %s36
    %s70 = ssub.s32 %s67, %s68
    %s71 = sor.u32 %s69, %s70
    %p72 = scmp.eq.s32.totalorder %s71, 0
    %s74 = sadd.s32 %s73, 1
    %s75 = scalar_select %p72, %s73, %s74
    %p78 = pneg %p72
    %p79 = scmp.eq.s32.totalorder %s10, 1
    %p80 = por %p78, %p79
    %p81 = scmp.ne.s32.totalorder %s73, %s76
    %p82 = scmp.eq.s32.totalorder %s10, 0
    %p83 = por %p81, %p82
    %p84 = scmp.ne.s32.totalorder %s73, %s76
    %p85 = scmp.eq.s32.totalorder %s15, 1
    %p86 = por %p84, %p85
    %p87 = scmp.ne.s32.totalorder %s76, %s77
    %p88 = scmp.eq.s32.totalorder %s15, 0
    %p89 = por %p87, %p88
    %p90 = scmp.ne.s32.totalorder %s76, %s77
    %p91 = scmp.eq.s32.totalorder %s16, 1
    %p92 = por %p90, %p91
    %p94 = scmp.ne.s32.totalorder %s77, %s93
    %p95 = scmp.eq.s32.totalorder %s16, 0
    %p96 = por %p94, %p95
    %s97 = sadd.s32 %s17, %s18
    %s98 = sadd.s32 %s36, %s32
    %s99 = ssub.s32 %s97, %s98
    %p100 = scmp.eq.s32.totalorder %s99, 0
    %s102 = sadd.s32 %s101, 1
    %s103 = scalar_select %p100, %s101, %s102
    %p106 = pneg %p100
    %p107 = scmp.eq.s32.totalorder %s10, 1
    %p108 = por %p106, %p107
    %p109 = scmp.ne.s32.totalorder %s101, %s104
    %p110 = scmp.eq.s32.totalorder %s10, 0
    %p111 = por %p109, %p110
    %p112 = scmp.ne.s32.totalorder %s101, %s104
    %p113 = scmp.eq.s32.totalorder %s15, 1
    %p114 = por %p112, %p113
    %p115 = scmp.ne.s32.totalorder %s104, %s105
    %p116 = scmp.eq.s32.totalorder %s15, 0
    %p117 = por %p115, %p116
    %p118 = scmp.ne.s32.totalorder %s104, %s105
    %p119 = scmp.eq.s32.totalorder %s16, 1
    %p120 = por %p118, %p119
    %p122 = scmp.ne.s32.totalorder %s105, %s121
    %p123 = scmp.eq.s32.totalorder %s16, 0
    %p124 = por %p122, %p123
    %s125 = sadd.s32 %s17, %s18
    %s126 = sadd.s32 %s36, %s32
    %s127 = ssub.s32 %s125, %s126
    %p128 = scmp.eq.s32.totalorder %s127, 0
    %s130 = sadd.s32 %s129, 1
    %s131 = scalar_select %p128, %s129, %s130
    %p134 = pneg %p128
    %p135 = scmp.eq.s32.totalorder %s10, 1
    %p136 = por %p134, %p135
    %p137 = scmp.ne.s32.totalorder %s129, %s132
    %p138 = scmp.eq.s32.totalorder %s10, 0
    %p139 = por %p137, %p138
    %p140 = scmp.ne.s32.totalorder %s129, %s132
    %p141 = scmp.eq.s32.totalorder %s15, 1
    %p142 = por %p140, %p141
    %p143 = scmp.ne.s32.totalorder %s132, %s133
    %p144 = scmp.eq.s32.totalorder %s15, 0
    %p145 = por %p143, %p144
    %p146 = scmp.ne.s32.totalorder %s132, %s133
    %p147 = scmp.eq.s32.totalorder %s16, 1
    %p148 = por %p146, %p147
    %p150 = scmp.ne.s32.totalorder %s133, %s149
    %p151 = scmp.eq.s32.totalorder %s16, 0
    %p152 = por %p150, %p151
    %p153 = scmp.le.s32.totalorder 1, %s10
    %p154 = scmp.lt.s32.totalorder %s10, 3
    %p155 = pnand %p153, %p154
    %p156 = pneg %p155
    // Predicated region
    $region9: #{cross_entropy_loss_2d.1} parent=5 // pred_check
      _
    $region10: #{cross_entropy_loss_2d.1} parent=5 // pred_check_branch
      %158 = sbr.rel (%p155) target = $region12
    $region11: #{cross_entropy_loss_2d.1} parent=5 // pred_region
      %s159 = ssub.s32 %s10, 1
    $region12: #{cross_entropy_loss_2d.1} parent=5 // pred_fallthru
      _
    %p160 = scmp.lt.s32.totalorder %s10, 2
    // Predicated region
    $region13: #{cross_entropy_loss_2d.1} parent=5 // pred_check
      %p161 = pneg %p160
    $region14: #{cross_entropy_loss_2d.1} parent=5 // pred_check_branch
      %163 = sbr.rel (%p161) target = $region16
    $region15: #{cross_entropy_loss_2d.1} parent=5 // pred_region
      // Predicated region
      $region17: #{cross_entropy_loss_2d.1} parent=15 // pred_check
        %p164 = pneg %p53
      $region18: #{cross_entropy_loss_2d.1} parent=15 // pred_check_branch
        %166 = sbr.rel (%p164) target = $region20
      $region19: #{cross_entropy_loss_2d.1} parent=15 // pred_region
        %s167 = sadd.s32 %s18, %s19
        %s168 = smul.u32 2, %s167
        %p169 = scmp.lt.s32.totalorder %s17, 1
        %s170 = scalar_select %p169, %s17, 1
        %p171 = scmp.lt.s32.totalorder %s168, 1
        %s172 = scalar_select %p171, %s168, 1
        %s173 = smul.addr %s170, 2
        %s174 = sadd.s32 %s172, %s173
        %s175 = smul.addr %s174, 4
        %s176 = scalar_lea.vmem %s0, %s175
        %s177 = sadd.s32 %s18, %s19
        %s178 = smul.u32 2, %s177
      $region20: #{cross_entropy_loss_2d.1} parent=15 // pred_fallthru
        _
      // Predicated region
      $region21: #{cross_entropy_loss_2d.1} parent=15 // pred_check
        %p179 = pneg %p83
      $region22: #{cross_entropy_loss_2d.1} parent=15 // pred_check_branch
        %181 = sbr.rel (%p179) target = $region24
      $region23: #{cross_entropy_loss_2d.1} parent=15 // pred_region
        %s182 = sadd.s32 %s18, %s19
        %s183 = smul.u32 2, %s182
        %p184 = scmp.lt.s32.totalorder %s17, 1
        %s185 = scalar_select %p184, %s17, 1
        %p186 = scmp.lt.s32.totalorder %s183, 1
        %s187 = scalar_select %p186, %s183, 1
        %s188 = smul.addr %s185, 2
        %s189 = sadd.s32 %s187, %s188
        %s190 = scalar_lea.vmem %s1, %s189
        %s191 = sadd.s32 %s18, %s19
        %s192 = smul.u32 2, %s191
      $region24: #{cross_entropy_loss_2d.1} parent=15 // pred_fallthru
        _
    $region16: #{cross_entropy_loss_2d.1} parent=5 // pred_fallthru
      _
    %p193 = scmp.le.s32.totalorder 1, %s10
    %p194 = scmp.lt.s32.totalorder %s10, 3
    %p195 = pnand %p193, %p194
    %p196 = pneg %p195
    // Predicated region
    $region25: #{cross_entropy_loss_2d.1} parent=5 // pred_check
      _
    $region26: #{cross_entropy_loss_2d.1} parent=5 // pred_check_branch
      %198 = sbr.rel (%p195) target = $region28
    $region27: #{cross_entropy_loss_2d.1} parent=5 // pred_region
      %s199 = ssub.s32 %s10, 1
      %s200 = sadd.s32 %s21, %s22
      %s201 = smul.u32 2, %s200
      %p202 = scmp.lt.s32.totalorder %s20, 1
      %s203 = scalar_select %p202, %s20, 1
      %p204 = scmp.lt.s32.totalorder %s201, 1
      %s205 = scalar_select %p204, %s201, 1
      %s206 = smul.addr %s203, 2
      %s207 = sadd.s32 %s205, %s206
      %s208 = smul.addr %s207, 4
      %s209 = scalar_lea.vmem %s0, %s208
      %p210 = pneg %p59
      %p211 = pneg %p56
      %s212 = sadd.s32 %s21, %s22
      %s213 = smul.u32 2, %s212
      %p214 = scmp.lt.s32.totalorder %s20, 1
      %s215 = scalar_select %p214, %s20, 1
      %p216 = scmp.lt.s32.totalorder %s213, 1
      %s217 = scalar_select %p216, %s213, 1
      %s218 = smul.addr %s215, 2
      %s219 = sadd.s32 %s217, %s218
      %s220 = scalar_lea.vmem %s1, %s219
      %p221 = pneg %p89
      %p222 = pneg %p86
      %p223 = pneg %p117
      %p224 = pneg %p114
      %s225 = sadd.s32 %s20, %s21
      %p226 = scmp.lt.s32.totalorder %s225, 1
      %s227 = scalar_select %p226, %s225, 1
      %s228 = smul.addr %s227, 8
      %s229 = scalar_lea.vmem %s2, %s228
      %p230 = pneg %p145
      %p231 = pneg %p142
      %s232 = sadd.s32 %s20, %s21
      %p233 = scmp.lt.s32.totalorder %s232, 1
      %s234 = scalar_select %p233, %s232, 1
      %s235 = smul.addr %s234, 8
      %s236 = scalar_lea.vmem %s3, %s235
      %s237 = sadd.s32 %s21, %s22
      %s238 = smul.u32 2, %s237
      %p239 = scmp.lt.s32.totalorder %s20, 1
      %s240 = scalar_select %p239, %s20, 1
      %p241 = scmp.lt.s32.totalorder %s238, 1
      %s242 = scalar_select %p241, %s238, 1
      %s243 = smul.addr %s240, 2
      %s244 = sadd.s32 %s242, %s243
      %s245 = smul.addr %s244, 4
      %s246 = scalar_lea.vmem %s0, %s245
      %s247 = sadd.s32 %s21, %s22
      %s248 = smul.u32 2, %s247
      %s249 = sadd.s32 %s21, %s22
      %s250 = smul.u32 2, %s249
      %p251 = scmp.lt.s32.totalorder %s20, 1
      %s252 = scalar_select %p251, %s20, 1
      %p253 = scmp.lt.s32.totalorder %s250, 1
      %s254 = scalar_select %p253, %s250, 1
      %s255 = smul.addr %s252, 2
      %s256 = sadd.s32 %s254, %s255
      %s257 = scalar_lea.vmem %s1, %s256
      %s258 = sadd.s32 %s21, %s22
      %s259 = smul.u32 2, %s258
      %s260 = sadd.s32 %s20, %s21
      %p261 = scmp.lt.s32.totalorder %s260, 1
      %s262 = scalar_select %p261, %s260, 1
      %s263 = smul.addr %s262, 8
      %s264 = scalar_lea.vmem %s2, %s263
      %s265 = sadd.s32 %s20, %s21
      %s266 = sadd.s32 %s20, %s21
      %p267 = scmp.lt.s32.totalorder %s266, 1
      %s268 = scalar_select %p267, %s266, 1
      %s269 = smul.addr %s268, 8
      %s270 = scalar_lea.vmem %s3, %s269
      %s271 = sadd.s32 %s20, %s21
      %p272 = scmp.eq.s32.totalorder %s22, 0
      // Predicated region
      $region29: #{cross_entropy_loss_2d.1} parent=27 // pred_check
        %p273 = pneg %p272
      $region30: #{cross_entropy_loss_2d.1} parent=27 // pred_check_branch
        %275 = sbr.rel (%p273) target = $region32
      $region31: #{cross_entropy_loss_2d.1} parent=27 // pred_region
        %276 = vst [vmem:[%s264] sm:$0xff] 0.0
        %277 = vst [vmem:[%s270] sm:$0xff] 0.0
      $region32: #{cross_entropy_loss_2d.1} parent=27 // pred_fallthru
        _
      %v278 = vld [vmem:[%s246] sm:$0xff]
      %v279 = vld [vmem:[%s257] sm:$0x3]
      %s280 = sadd.s32 %s21, %s22
      %v281 = vlaneseq
      %v282 = vand.u32 %v281, 127
      %v283 = vadd.s32 %v282, 128
      %s284 = smul.u32 %s280, 256
      %v285 = vstv %s284
      %v286 = vadd.s32 %v282, %v285
      %v287 = vadd.s32 %v283, %v285
      %vm288 = vcmp.ne.s32.totalorder %v279, 255
      %vm289 = vcmp.lt.s32.totalorder %v286, 256
      %vm290 = vcmp.lt.s32.totalorder %v287, 256
      %v291 = vsel %vm289, 1, 0
      %v292 = vsel %vm290, 1, 0
      %v293 = vcombine.low %v291, %v292
      %v295 = vunpack.c.l.s4 1966171168
      %v296 = vunpack.c.0.s8 %v295
      %v297 = vlaneseq
      %v298 = vshrl.u32 %v297, 7
      %v299 = vsub.s32 %v296, %v298
      %v300 = vrot.slane %v293, %v299
      %v302 = vunpack.c.l.s4 1966171168
      %v303 = vunpack.c.0.s8 %v302
      %v304 = vlaneseq
      %v305 = vshrl.u32 %v304, 7
      %v306 = vsub.s32 %v303, %v305
      %v307 = vrot.slane %v300, %v306
      %vm308 = vcmp.ne.s32.totalorder %v307, 0
      %vm309 = vmand %vm288, %vm308
      %v311 = vcombine.high %v278, %v278
      %vm313 = vcmask 1043456
      %v314 = vsel %vm313, %v278, -inf
      %v315 = vrot.slane %v314, 4
      %v316 = vmax.f32 %v314, %v315
      %v317 = vrot.slane %v316, 2
      %v318 = vmax.f32 %v316, %v317
      %v319 = vrot.slane %v318, 1
      %v320 = vmax.f32 %v318, %v319
      %v321 = vsel %vm313, %v311, -inf
      %v322 = vrot.slane %v321, 4
      %v323 = vmax.f32 %v321, %v322
      %v324 = vrot.slane %v323, 2
      %v325 = vmax.f32 %v323, %v324
      %v326 = vrot.slane %v325, 1
      %v327 = vmax.f32 %v325, %v326
      %v330 = vcombine.low %v320, %v327
      %v332 = vsub.f32 %v278, %v330
      %v333 = vmul.f32 %v332, 1.442695
      %v334 = vpow.pop %v333
      %v336 = vcombine.high %v334, %v334
      %v338 = vsel %vm313, %v334, 0.0
      %v339 = vrot.slane %v338, 4
      %v340 = vadd.f32 %v338, %v339
      %v341 = vrot.slane %v340, 2
      %v342 = vadd.f32 %v340, %v341
      %v343 = vrot.slane %v342, 1
      %v344 = vadd.f32 %v342, %v343
      %v345 = vsel %vm313, %v336, 0.0
      %v346 = vrot.slane %v345, 4
      %v347 = vadd.f32 %v345, %v346
      %v348 = vrot.slane %v347, 2
      %v349 = vadd.f32 %v347, %v348
      %v350 = vrot.slane %v349, 1
      %v351 = vadd.f32 %v349, %v350
      %v352 = vlog2.pop %v344
      %v353 = vmul.f32 %v352, 0.6931472
      %v354 = vlog2.pop %v351
      %v355 = vmul.f32 %v354, 0.6931472
      %v356 = vlaneseq
      %v357 = vshrl.u32 %v356, 7
      %v358 = vlaneseq
      %v359 = vshrl.u32 %v358, 7
      %v360 = vsub.s32 0, %v359
      %v361 = vrot.slane %v279, %v360
      %v362 = vlaneseq
      %v363 = vshrl.u32 %v362, 7
      %v364 = vsub.s32 1, %v363
      %v365 = vrot.slane %v279, %v364
      %vm366 = vcmp.eq.s32.totalorder %v357, %v361
      %vm367 = vcmp.eq.s32.totalorder %v357, %v365
      %v368 = vsel %vm366, 1, 0
      %v369 = vsel %vm367, 1, 0
      %v370 = vcvt.s32.f32 %v368
      %v371 = vcvt.s32.f32 %v369
      %v374 = vcombine.low %v370, %v371
      %v376 = vmul.f32 %v278, %v374
      %v378 = vcombine.high %v376, %v376
      %v380 = vsel %vm313, %v376, 0.0
      %v381 = vrot.slane %v380, 4
      %v382 = vadd.f32 %v380, %v381
      %v383 = vrot.slane %v382, 2
      %v384 = vadd.f32 %v382, %v383
      %v385 = vrot.slane %v384, 1
      %v386 = vadd.f32 %v384, %v385
      %v387 = vsel %vm313, %v378, 0.0
      %v388 = vrot.slane %v387, 4
      %v389 = vadd.f32 %v387, %v388
      %v390 = vrot.slane %v389, 2
      %v391 = vadd.f32 %v389, %v390
      %v392 = vrot.slane %v391, 1
      %v393 = vadd.f32 %v391, %v392
      %v394 = vadd.f32 %v320, %v353
      %v395 = vadd.f32 %v327, %v355
      %v396 = vsub.f32 %v394, %v386
      %v397 = vsub.f32 %v395, %v393
      %v400 = vcombine.low %v396, %v397
      %v402 = vunpack.c.l.s4 1966171168
      %v403 = vunpack.c.0.s8 %v402
      %v404 = vlaneseq
      %v405 = vshrl.u32 %v404, 7
      %v406 = vsub.s32 %v403, %v405
      %v407 = vrot.slane %v400, %v406
      %v409 = vunpack.c.l.s4 1966171168
      %v410 = vunpack.c.0.s8 %v409
      %v411 = vlaneseq
      %v412 = vshrl.u32 %v411, 7
      %v413 = vsub.s32 %v410, %v412
      %v414 = vrot.slane %v407, %v413
      %v416 = vsel %vm309, %v414, 0.0
      %v417 = vld [vmem:[%s264] sm:$0xff]
      %v419 = vlaneseq
      %v420 = vshrl.u32 %v419, 7
      %v421 = vsub.s32 0, %v420
      %v422 = vrot.slane %v416, %v421
      %v423 = vlaneseq
      %v424 = vshrl.u32 %v423, 7
      %v425 = vsub.s32 1, %v424
      %v426 = vrot.slane %v416, %v425
      %vm429 = vcmask 1040384
      %v430 = vsel %vm429, %v422, 0.0
      %v431 = vsel %vm429, %v426, 0.0
      %v432 = vadd.f32 %v430, %v431
      %433 = vadd.xlane.f32.xlu0 %v432
      %v434 = vpop.xlane.xlu0 %433
      %v435 = vrot.slane %v434, 4
      %v436 = vadd.f32 %v434, %v435
      %v437 = vrot.slane %v436, 2
      %v438 = vadd.f32 %v436, %v437
      %v439 = vrot.slane %v438, 1
      %v440 = vadd.f32 %v438, %v439
      %s441 = vtos %v440
      %v442 = vstv %s441
      %v443 = vadd.f32 %v417, %v442
      %444 = vst [vmem:[%s264] sm:$0xff] %v443
      %v445 = vld [vmem:[%s270] sm:$0xff]
      %v446 = vsel %vm309, 1, 0
      %v447 = vcvt.s32.f32 %v446
      %v449 = vlaneseq
      %v450 = vshrl.u32 %v449, 7
      %v451 = vsub.s32 0, %v450
      %v452 = vrot.slane %v447, %v451
      %v453 = vlaneseq
      %v454 = vshrl.u32 %v453, 7
      %v455 = vsub.s32 1, %v454
      %v456 = vrot.slane %v447, %v455
      %v459 = vsel %vm429, %v452, 0.0
      %v460 = vsel %vm429, %v456, 0.0
      %v461 = vadd.f32 %v459, %v460
      %462 = vadd.xlane.f32.xlu0 %v461
      %v463 = vpop.xlane.xlu0 %462
      %v464 = vrot.slane %v463, 4
      %v465 = vadd.f32 %v463, %v464
      %v466 = vrot.slane %v465, 2
      %v467 = vadd.f32 %v465, %v466
      %v468 = vrot.slane %v467, 1
      %v469 = vadd.f32 %v467, %v468
      %s470 = vtos %v469
      %v471 = vstv %s470
      %v472 = vadd.f32 %v445, %v471
      %473 = vst [vmem:[%s270] sm:$0xff] %v472
      %s474 = sadd.s32 %s20, %s21
      %p475 = scmp.lt.s32.totalorder %s474, 1
      %s476 = scalar_select %p475, %s474, 1
      %s477 = smul.addr %s476, 8
      %s478 = scalar_lea.vmem %s2, %s477
      %s479 = sadd.s32 %s20, %s21
      %p480 = scmp.lt.s32.totalorder %s479, 1
      %s481 = scalar_select %p480, %s479, 1
      %s482 = smul.addr %s481, 8
      %s483 = scalar_lea.vmem %s3, %s482
      // Predicated region
      $region33: #{cross_entropy_loss_2d.1} parent=27 // pred_check
        %p484 = pneg %p114
      $region34: #{cross_entropy_loss_2d.1} parent=27 // pred_check_branch
        %486 = sbr.rel (%p484) target = $region36
      $region35: #{cross_entropy_loss_2d.1} parent=27 // pred_region
        %s487 = sadd.s32 %s20, %s21
      $region36: #{cross_entropy_loss_2d.1} parent=27 // pred_fallthru
        _
      // Predicated region
      $region37: #{cross_entropy_loss_2d.1} parent=27 // pred_check
        %p488 = pneg %p142
      $region38: #{cross_entropy_loss_2d.1} parent=27 // pred_check_branch
        %490 = sbr.rel (%p488) target = $region40
      $region39: #{cross_entropy_loss_2d.1} parent=27 // pred_region
        %s491 = sadd.s32 %s20, %s21
      $region40: #{cross_entropy_loss_2d.1} parent=27 // pred_fallthru
        _
    $region28: #{cross_entropy_loss_2d.1} parent=5 // pred_fallthru
      _
    %p492 = scmp.le.s32.totalorder 2, %s10
    // Predicated region
    $region41: #{cross_entropy_loss_2d.1} parent=5 // pred_check
      %p493 = pneg %p492
    $region42: #{cross_entropy_loss_2d.1} parent=5 // pred_check_branch
      %495 = sbr.rel (%p493) target = $region44
    $region43: #{cross_entropy_loss_2d.1} parent=5 // pred_region
      %s496 = ssub.s32 %s10, 2
      // Predicated region
      $region45: #{cross_entropy_loss_2d.1} parent=43 // pred_check
        %p497 = pneg %p120
      $region46: #{cross_entropy_loss_2d.1} parent=43 // pred_check_branch
        %499 = sbr.rel (%p497) target = $region48
      $region47: #{cross_entropy_loss_2d.1} parent=43 // pred_region
        %s500 = sadd.s32 %s23, %s24
        %p501 = scmp.lt.s32.totalorder %s500, 1
        %s502 = scalar_select %p501, %s500, 1
        %s503 = smul.addr %s502, 8
        %s504 = scalar_lea.vmem %s2, %s503
      $region48: #{cross_entropy_loss_2d.1} parent=43 // pred_fallthru
        _
      // Predicated region
      $region49: #{cross_entropy_loss_2d.1} parent=43 // pred_check
        %p505 = pneg %p148
      $region50: #{cross_entropy_loss_2d.1} parent=43 // pred_check_branch
        %507 = sbr.rel (%p505) target = $region52
      $region51: #{cross_entropy_loss_2d.1} parent=43 // pred_region
        %s508 = sadd.s32 %s23, %s24
        %p509 = scmp.lt.s32.totalorder %s508, 1
        %s510 = scalar_select %p509, %s508, 1
        %s511 = smul.addr %s510, 8
        %s512 = scalar_lea.vmem %s3, %s511
      $region52: #{cross_entropy_loss_2d.1} parent=43 // pred_fallthru
        _
    $region44: #{cross_entropy_loss_2d.1} parent=5 // pred_fallthru
      _
  $region6: #{cross_entropy_loss_2d.1} parent=0 // loop_footer
    %s14 = sadd.s32 1, %s10
  $region7: #{cross_entropy_loss_2d.1} parent=0 // loop_footer_branch
    %9 = sbr.rel target = $region3
  $region8: #{cross_entropy_loss_2d.1} parent=0 // loop_exit
    _

</llo_original>
